<compile_context>
chip_gen: v6e
topology: v6e:2x2x1
jax: 0.10.0
libtpu: 0.0.40
codegen_flags: <defaults>
</compile_context>

<pallas_src>
import functools

import jax
import jax.numpy as jnp
from jax.experimental import pallas as pl
from jax.experimental.pallas import tpu as pltpu


def _round_up(v, m):
    return (v + m - 1) // m * m


def _is_pow2(v):
    return v > 0 and (v & (v - 1)) == 0


def _resblock_kernel(x_ref, w1_ref, b1_ref, w2_ref, b2_ref, o_ref, *,
                     img_h, img_w, samples, eps, matmul_dtype):
    """x_ref block: (C_p, Lb) lane-dense slab; Lb = samples * H * W."""
    H, W, s = img_h, img_w, samples
    HW = H * W
    x = x_ref[...].astype(jnp.float32)
    Lb = x.shape[-1]

    # Boundary masks from an in-kernel lane iota (no HBM mask input / DMA).
    lane = jax.lax.broadcasted_iota(jnp.int32, (1, Lb), 1)
    if _is_pow2(W) and _is_pow2(HW):
        pos = lane & (HW - 1)                      # position within a sample
        col = pos & (W - 1)
        row = pos >> (W.bit_length() - 1)
    else:
        pos = lane % HW
        col = pos % W
        row = pos // W
    first_row = row == 0
    last_row = row == H - 1
    first_col = col == 0
    last_col = col == W - 1

    def rot(a, sh):
        # result[:, i] = a[:, (i - sh) % Lb]   (sh static, positive)
        return pltpu.roll(a, sh % Lb, axis=1)

    def conv3x3(a, w_ref, b_ref):
        # Reflect-padded 3x3 conv as ONE stacked MXU matmul:
        #   RHS = 9 reflect-shifted views of `a`, stacked along the contraction
        #         (sublane) axis -> (9*Cin_p, Lb), cast to bf16,
        #   LHS = per-tap weights reshaped to (Cout_p, 9*Cin_p) (already bf16).
        # Cross-sample wrap from the rolls only reaches first/last row/col lanes,
        # where the jnp.where reflect fixup picks the other direction anyway.
        above = rot(a, W)            # value of row h-1 (wraps; fixed below)
        below = rot(a, Lb - W)       # value of row h+1
        verts = (jnp.where(first_row, below, above),   # kh=0: reflect row -1 -> 1
                 a,                                    # kh=1
                 jnp.where(last_row, above, below))    # kh=2: reflect row H -> H-2
        taps = []
        for v in verts:
            left = rot(v, 1)         # value of col w-1
            right = rot(v, Lb - 1)   # value of col w+1
            taps.append(jnp.where(first_col, right, left))   # kw=0: col -1 -> 1
            taps.append(v)                                    # kw=1
            taps.append(jnp.where(last_col, left, right))     # kw=2: col W -> W-2
        stacked = jnp.concatenate(taps, axis=0).astype(matmul_dtype)
        acc = jnp.dot(w_ref[...], stacked, preferred_element_type=jnp.float32)
        return acc + b_ref[...]

    def inorm(a):
        # InstanceNorm2d (affine=False): per-(channel, sample) stats over each
        # HW lane segment.  Single pass (var = E[x^2] - mean^2) in f32; the two
        # reductions are independent, rsqrt goes to the EUP slot.
        inv = 1.0 / HW
        parts = []
        for j in range(s):                        # static unroll, s is small
            seg = a[:, j * HW:(j + 1) * HW]       # static 128-aligned lane slice
            mu = jnp.sum(seg, axis=1, keepdims=True) * inv
            ms = jnp.sum(seg * seg, axis=1, keepdims=True) * inv
            var = jnp.maximum(ms - mu * mu, 0.0)
            parts.append((seg - mu) * jax.lax.rsqrt(var + eps))
        return parts[0] if s == 1 else jnp.concatenate(parts, axis=1)

    h = jnp.maximum(inorm(conv3x3(x, w1_ref, b1_ref)), 0.0)
    h = inorm(conv3x3(h, w2_ref, b2_ref))
    o_ref[...] = (x + h).astype(o_ref.dtype)


def _stacked_taps(w, *, cout_p, cin_p, dtype):
    """(cout, cin, 3, 3) -> (cout_p, 9*cin_p), columns ordered (kh, kw, cin),
    zero-padded channels; shipped in the matmul dtype (bf16 by default)."""
    cout, cin = w.shape[0], w.shape[1]
    wp = jnp.zeros((cout_p, cin_p, 3, 3), jnp.float32)
    wp = wp.at[:cout, :cin].set(w.astype(jnp.float32))
    return jnp.transpose(wp, (0, 2, 3, 1)).reshape(cout_p, 9 * cin_p).astype(dtype)


def _padded_bias(b, *, c_p):
    return jnp.zeros((c_p, 1), jnp.float32).at[:b.shape[0], 0].set(
        b.astype(jnp.float32))


def _auto_samples_per_step(n, c_p, hw):
    """Shape-conditional batch/lane chunking: whole batch in one grid step at
    small shapes (per-step overhead > compute there); chunk by whole samples at
    large shapes so double-buffered x/out slabs stay well inside VMEM (v7x's
    64 MiB included) and the 'parallel' grid axis can feed 2 TensorCores."""
    budget = 12 << 20
    per_sample = 2 * 2 * c_p * hw * 4        # x + out, double-buffered, f32
    for s in range(n, 0, -1):
        if n % s == 0 and s * per_sample <= budget:
            return s
    return 1


def residual_block_2l(x, w1, b1, w2, b2, eps=1e-5, samples_per_step=None,
                      matmul_dtype=jnp.bfloat16):
    """x: (N, C, H, W); w1: (Ci, C, 3, 3); b1: (Ci,); w2: (C, Ci, 3, 3); b2: (C,)."""
    N, C, H, W = x.shape
    Ci = w1.shape[0]
    HW = H * W
    C_p = _round_up(C, 8)
    Ci_p = _round_up(Ci, 8)

    s = (_auto_samples_per_step(N, C_p, HW) if samples_per_step is None
         else samples_per_step)
    assert N % s == 0, "samples_per_step must divide the batch size"
    grid = N // s
    Lb = s * HW

    # Batch on the lane axis: (C_p, N*H*W) slab; each sample owns a contiguous
    # HW lane segment.
    xp = x.astype(jnp.float32)
    if C_p != C:
        xp = jnp.pad(xp, ((0, 0), (0, C_p - C), (0, 0), (0, 0)))
    x2 = jnp.transpose(xp, (1, 0, 2, 3)).reshape(C_p, N * HW)

    w1s = _stacked_taps(w1, cout_p=Ci_p, cin_p=C_p, dtype=matmul_dtype)
    w2s = _stacked_taps(w2, cout_p=C_p, cin_p=Ci_p, dtype=matmul_dtype)
    b1c = _padded_bias(b1, c_p=Ci_p)
    b2c = _padded_bias(b2, c_p=C_p)

    kernel = functools.partial(_resblock_kernel, img_h=H, img_w=W, samples=s,
                               eps=eps, matmul_dtype=matmul_dtype)

    out2 = pl.pallas_call(
        kernel,
        out_shape=jax.ShapeDtypeStruct((C_p, N * HW), x.dtype),
        grid_spec=pltpu.PrefetchScalarGridSpec(
            num_scalar_prefetch=0,
            grid=(grid,),
            in_specs=[
                pl.BlockSpec((C_p, Lb), lambda g: (0, g)),         # x slab chunk
                pl.BlockSpec((Ci_p, 9 * C_p), lambda g: (0, 0)),   # conv1 taps
                pl.BlockSpec((Ci_p, 1), lambda g: (0, 0)),         # conv1 bias
                pl.BlockSpec((C_p, 9 * Ci_p), lambda g: (0, 0)),   # conv2 taps
                pl.BlockSpec((C_p, 1), lambda g: (0, 0)),          # conv2 bias
            ],
            out_specs=pl.BlockSpec((C_p, Lb), lambda g: (0, g)),
        ),
        compiler_params=pltpu.CompilerParams(
            dimension_semantics=("parallel",)),
    )(x2, w1s, b1c, w2s, b2c)

    out = jnp.transpose(out2.reshape(C_p, N, H, W), (1, 0, 2, 3))
    if C_p != C:
        out = out[:, :C]
    return out


def _reference_forward(x, w1, b1, w2, b2, eps=1e-5):
    """Pure-JAX reference matching the PyTorch module semantics."""
    def conv(a, w, b):
        ap = jnp.pad(a, ((0, 0), (0, 0), (1, 1), (1, 1)), mode="reflect")
        out = jax.lax.conv_general_dilated(
            ap, w, window_strides=(1, 1), padding="VALID",
            dimension_numbers=("NCHW", "OIHW", "NCHW"))
        return out + b[None, :, None, None]

    def inorm(a):
        m = jnp.mean(a, axis=(2, 3), keepdims=True)
        v = jnp.mean(jnp.square(a - m), axis=(2, 3), keepdims=True)
        return (a - m) * jax.lax.rsqrt(v + eps)

    h = jnp.maximum(inorm(conv(x, w1, b1)), 0.0)
    h = inorm(conv(h, w2, b2))
    return x + h


if __name__ == "__main__":
    # Module config: ic_conv = oc_conv = 8, expansion = 4 -> oc_convi = 2,
    # downsample=False (stride 1), norm='instance', pad_type='reflect'.
    N, C, H, W = 2, 8, 16, 16
    Ci = C // 4  # oc_convi

    key = jax.random.PRNGKey(0)
    kx, k1, k2, k3, k4 = jax.random.split(key, 5)

    x = jax.random.normal(kx, (N, C, H, W), dtype=jnp.float32)
    w1 = 0.1 * jax.random.normal(k1, (Ci, C, 3, 3), dtype=jnp.float32)
    b1 = 0.1 * jax.random.normal(k2, (Ci,), dtype=jnp.float32)
    w2 = 0.1 * jax.random.normal(k3, (C, Ci, 3, 3), dtype=jnp.float32)
    b2 = 0.1 * jax.random.normal(k4, (C,), dtype=jnp.float32)

    ref = jax.block_until_ready(_reference_forward(x, w1, b1, w2, b2))

    # Default path: bf16 MXU operands, whole batch on the lane axis, 1 grid step.
    out = jax.block_until_ready(residual_block_2l(x, w1, b1, w2, b2))
    assert out.shape == (N, C, H, W)
    assert jnp.allclose(out, ref, atol=1e-1, rtol=1e-1), (
        f"bf16 path max abs diff {jnp.max(jnp.abs(out - ref))}")

    # f32-operand path: algorithmic exactness vs. the reference (tight tol).
    out_f32 = jax.block_until_ready(
        residual_block_2l(x, w1, b1, w2, b2, matmul_dtype=jnp.float32))
    assert jnp.allclose(out_f32, ref, atol=1e-4, rtol=1e-4), (
        f"f32 path max abs diff {jnp.max(jnp.abs(out_f32 - ref))}")

    # Chunked path (grid=2, 'parallel' axis as used for 2-TC v7x at large N).
    out_split = jax.block_until_ready(
        residual_block_2l(x, w1, b1, w2, b2, samples_per_step=1,
                          matmul_dtype=jnp.float32))
    assert jnp.allclose(out_split, ref, atol=1e-4, rtol=1e-4), (
        f"split path max abs diff {jnp.max(jnp.abs(out_split - ref))}")

    print("KERNEL_OK")
</pallas_src>

<mosaic_0001>
module attributes {stable_mosaic.version = 11 : i64} {
  func.func @_resblock_kernel(%arg0: i32, %arg1: memref<8x512xf32, #tpu.memory_space<vmem>>, %arg2: memref<8x72xbf16, #tpu.memory_space<vmem>>, %arg3: memref<8x1xf32, #tpu.memory_space<vmem>>, %arg4: memref<8x72xbf16, #tpu.memory_space<vmem>>, %arg5: memref<8x1xf32, #tpu.memory_space<vmem>>, %arg6: memref<8x512xf32, #tpu.memory_space<vmem>>) attributes {dimension_semantics = [#tpu.dimension_semantics<parallel>], iteration_bounds = array<i64: 1>, scalar_prefetch = 0 : i64, scratch_operands = 0 : i64, tpu.core_type = #tpu.core_type<tc>, window_params = [{transform_indices = @transform_0, window_bounds = array<i64: 8, 512>}, {pipeline_mode = #tpu.pipeline_mode<synchronous>, transform_indices = @transform_1, window_bounds = array<i64: 8, 72>}, {pipeline_mode = #tpu.pipeline_mode<synchronous>, transform_indices = @transform_2, window_bounds = array<i64: 8, 1>}, {pipeline_mode = #tpu.pipeline_mode<synchronous>, transform_indices = @transform_3, window_bounds = array<i64: 8, 72>}, {pipeline_mode = #tpu.pipeline_mode<synchronous>, transform_indices = @transform_4, window_bounds = array<i64: 8, 1>}, {transform_indices = @transform_5, window_bounds = array<i64: 8, 512>}]} {
    %c0 = arith.constant 0 : index
    %c0_0 = arith.constant 0 : index
    %0 = vector.load %arg1[%c0, %c0_0] : memref<8x512xf32, #tpu.memory_space<vmem>>, vector<8x512xf32>
    %1 = tpu.iota {dimensions = array<i32: 1>} : vector<1x512xi32>
    %c255_i32 = arith.constant 255 : i32
    %2 = vector.broadcast %c255_i32 : i32 to vector<1x512xi32>
    %3 = arith.andi %1, %2 : vector<1x512xi32>
    %c15_i32 = arith.constant 15 : i32
    %4 = vector.broadcast %c15_i32 : i32 to vector<1x512xi32>
    %5 = arith.andi %3, %4 : vector<1x512xi32>
    %c4_i32 = arith.constant 4 : i32
    %6 = vector.broadcast %c4_i32 : i32 to vector<1x512xi32>
    %7 = arith.shrsi %3, %6 : vector<1x512xi32>
    %c0_i32 = arith.constant 0 : i32
    %8 = vector.broadcast %c0_i32 : i32 to vector<1x512xi32>
    %9 = arith.cmpi eq, %7, %8 : vector<1x512xi32>
    %c15_i32_1 = arith.constant 15 : i32
    %10 = vector.broadcast %c15_i32_1 : i32 to vector<1x512xi32>
    %11 = arith.cmpi eq, %7, %10 : vector<1x512xi32>
    %c0_i32_2 = arith.constant 0 : i32
    %12 = vector.broadcast %c0_i32_2 : i32 to vector<1x512xi32>
    %13 = arith.cmpi eq, %5, %12 : vector<1x512xi32>
    %c15_i32_3 = arith.constant 15 : i32
    %14 = vector.broadcast %c15_i32_3 : i32 to vector<1x512xi32>
    %15 = arith.cmpi eq, %5, %14 : vector<1x512xi32>
    %c16_i32 = arith.constant 16 : i32
    %16 = tpu.dynamic_rotate %0 by %c16_i32 dim 1 : vector<8x512xf32>, i32 -> vector<8x512xf32>
    %c496_i32 = arith.constant 496 : i32
    %17 = tpu.dynamic_rotate %0 by %c496_i32 dim 1 : vector<8x512xf32>, i32 -> vector<8x512xf32>
    %18 = vector.shape_cast %9 : vector<1x512xi1> to vector<1x512xi1>
    %19 = vector.broadcast %18 : vector<1x512xi1> to vector<8x512xi1>
    %20 = arith.select %19, %17, %16 : vector<8x512xi1>, vector<8x512xf32>
    %21 = vector.shape_cast %11 : vector<1x512xi1> to vector<1x512xi1>
    %22 = vector.broadcast %21 : vector<1x512xi1> to vector<8x512xi1>
    %23 = arith.select %22, %16, %17 : vector<8x512xi1>, vector<8x512xf32>
    %c1_i32 = arith.constant 1 : i32
    %24 = tpu.dynamic_rotate %20 by %c1_i32 dim 1 : vector<8x512xf32>, i32 -> vector<8x512xf32>
    %c511_i32 = arith.constant 511 : i32
    %25 = tpu.dynamic_rotate %20 by %c511_i32 dim 1 : vector<8x512xf32>, i32 -> vector<8x512xf32>
    %26 = vector.shape_cast %13 : vector<1x512xi1> to vector<1x512xi1>
    %27 = vector.broadcast %26 : vector<1x512xi1> to vector<8x512xi1>
    %28 = arith.select %27, %25, %24 : vector<8x512xi1>, vector<8x512xf32>
    %29 = vector.shape_cast %15 : vector<1x512xi1> to vector<1x512xi1>
    %30 = vector.broadcast %29 : vector<1x512xi1> to vector<8x512xi1>
    %31 = arith.select %30, %24, %25 : vector<8x512xi1>, vector<8x512xf32>
    %c1_i32_4 = arith.constant 1 : i32
    %32 = tpu.dynamic_rotate %0 by %c1_i32_4 dim 1 : vector<8x512xf32>, i32 -> vector<8x512xf32>
    %c511_i32_5 = arith.constant 511 : i32
    %33 = tpu.dynamic_rotate %0 by %c511_i32_5 dim 1 : vector<8x512xf32>, i32 -> vector<8x512xf32>
    %34 = vector.shape_cast %13 : vector<1x512xi1> to vector<1x512xi1>
    %35 = vector.broadcast %34 : vector<1x512xi1> to vector<8x512xi1>
    %36 = arith.select %35, %33, %32 : vector<8x512xi1>, vector<8x512xf32>
    %37 = vector.shape_cast %15 : vector<1x512xi1> to vector<1x512xi1>
    %38 = vector.broadcast %37 : vector<1x512xi1> to vector<8x512xi1>
    %39 = arith.select %38, %32, %33 : vector<8x512xi1>, vector<8x512xf32>
    %c1_i32_6 = arith.constant 1 : i32
    %40 = tpu.dynamic_rotate %23 by %c1_i32_6 dim 1 : vector<8x512xf32>, i32 -> vector<8x512xf32>
    %c511_i32_7 = arith.constant 511 : i32
    %41 = tpu.dynamic_rotate %23 by %c511_i32_7 dim 1 : vector<8x512xf32>, i32 -> vector<8x512xf32>
    %42 = vector.shape_cast %13 : vector<1x512xi1> to vector<1x512xi1>
    %43 = vector.broadcast %42 : vector<1x512xi1> to vector<8x512xi1>
    %44 = arith.select %43, %41, %40 : vector<8x512xi1>, vector<8x512xf32>
    %45 = vector.shape_cast %15 : vector<1x512xi1> to vector<1x512xi1>
    %46 = vector.broadcast %45 : vector<1x512xi1> to vector<8x512xi1>
    %47 = arith.select %46, %40, %41 : vector<8x512xi1>, vector<8x512xf32>
    %48 = tpu.concatenate %28, %20, %31, %36, %0, %39, %44, %23, %47 in 0 : vector<8x512xf32>, vector<8x512xf32>, vector<8x512xf32>, vector<8x512xf32>, vector<8x512xf32>, vector<8x512xf32>, vector<8x512xf32>, vector<8x512xf32>, vector<8x512xf32> -> vector<72x512xf32>
    %49 = arith.truncf %48 : vector<72x512xf32> to vector<72x512xbf16>
    %c0_8 = arith.constant 0 : index
    %c0_9 = arith.constant 0 : index
    %50 = vector.load %arg2[%c0_8, %c0_9] : memref<8x72xbf16, #tpu.memory_space<vmem>>, vector<8x72xbf16>
    %cst = arith.constant dense<0.000000e+00> : vector<8x512xf32>
    %51 = tpu.matmul %50, %49, %cst {dimension_numbers = #tpu.dot_dimension_numbers<[1], [0], [0], [1], [0, 0, 1, 1], [], []>} : vector<8x72xbf16>, vector<72x512xbf16>, vector<8x512xf32> -> vector<8x512xf32>
    %c0_10 = arith.constant 0 : index
    %c0_11 = arith.constant 0 : index
    %52 = vector.load %arg3[%c0_10, %c0_11] : memref<8x1xf32, #tpu.memory_space<vmem>>, vector<8x1xf32>
    %53 = vector.broadcast %52 : vector<8x1xf32> to vector<8x512xf32>
    %54 = arith.addf %51, %53 : vector<8x512xf32>
    %55 = vector.extract_strided_slice %54 {offsets = [0, 0], sizes = [8, 256], strides = [1, 1]} : vector<8x512xf32> to vector<8x256xf32>
    %cst_12 = arith.constant dense<0.000000e+00> : vector<8xf32>
    %56 = vector.multi_reduction <add>, %55, %cst_12 [1] : vector<8x256xf32> to vector<8xf32>
    %57 = vector.shape_cast %56 : vector<8xf32> to vector<8x1xf32>
    %cst_13 = arith.constant 3.906250e-03 : f32
    %58 = vector.broadcast %cst_13 : f32 to vector<8x1xf32>
    %59 = arith.mulf %57, %58 : vector<8x1xf32>
    %60 = arith.mulf %55, %55 : vector<8x256xf32>
    %cst_14 = arith.constant dense<0.000000e+00> : vector<8xf32>
    %61 = vector.multi_reduction <add>, %60, %cst_14 [1] : vector<8x256xf32> to vector<8xf32>
    %62 = vector.shape_cast %61 : vector<8xf32> to vector<8x1xf32>
    %cst_15 = arith.constant 3.906250e-03 : f32
    %63 = vector.broadcast %cst_15 : f32 to vector<8x1xf32>
    %64 = arith.mulf %62, %63 : vector<8x1xf32>
    %65 = arith.mulf %59, %59 : vector<8x1xf32>
    %66 = arith.subf %64, %65 : vector<8x1xf32>
    %cst_16 = arith.constant 0.000000e+00 : f32
    %67 = vector.broadcast %cst_16 : f32 to vector<8x1xf32>
    %68 = arith.maximumf %66, %67 : vector<8x1xf32>
    %69 = vector.broadcast %59 : vector<8x1xf32> to vector<8x256xf32>
    %70 = arith.subf %55, %69 : vector<8x256xf32>
    %cst_17 = arith.constant 9.99999974E-6 : f32
    %71 = vector.broadcast %cst_17 : f32 to vector<8x1xf32>
    %72 = arith.addf %68, %71 : vector<8x1xf32>
    %73 = math.rsqrt %72 : vector<8x1xf32>
    %74 = vector.broadcast %73 : vector<8x1xf32> to vector<8x256xf32>
    %75 = arith.mulf %70, %74 : vector<8x256xf32>
    %76 = vector.extract_strided_slice %54 {offsets = [0, 256], sizes = [8, 256], strides = [1, 1]} : vector<8x512xf32> to vector<8x256xf32>
    %cst_18 = arith.constant dense<0.000000e+00> : vector<8xf32>
    %77 = vector.multi_reduction <add>, %76, %cst_18 [1] : vector<8x256xf32> to vector<8xf32>
    %78 = vector.shape_cast %77 : vector<8xf32> to vector<8x1xf32>
    %cst_19 = arith.constant 3.906250e-03 : f32
    %79 = vector.broadcast %cst_19 : f32 to vector<8x1xf32>
    %80 = arith.mulf %78, %79 : vector<8x1xf32>
    %81 = arith.mulf %76, %76 : vector<8x256xf32>
    %cst_20 = arith.constant dense<0.000000e+00> : vector<8xf32>
    %82 = vector.multi_reduction <add>, %81, %cst_20 [1] : vector<8x256xf32> to vector<8xf32>
    %83 = vector.shape_cast %82 : vector<8xf32> to vector<8x1xf32>
    %cst_21 = arith.constant 3.906250e-03 : f32
    %84 = vector.broadcast %cst_21 : f32 to vector<8x1xf32>
    %85 = arith.mulf %83, %84 : vector<8x1xf32>
    %86 = arith.mulf %80, %80 : vector<8x1xf32>
    %87 = arith.subf %85, %86 : vector<8x1xf32>
    %cst_22 = arith.constant 0.000000e+00 : f32
    %88 = vector.broadcast %cst_22 : f32 to vector<8x1xf32>
    %89 = arith.maximumf %87, %88 : vector<8x1xf32>
    %90 = vector.broadcast %80 : vector<8x1xf32> to vector<8x256xf32>
    %91 = arith.subf %76, %90 : vector<8x256xf32>
    %cst_23 = arith.constant 9.99999974E-6 : f32
    %92 = vector.broadcast %cst_23 : f32 to vector<8x1xf32>
    %93 = arith.addf %89, %92 : vector<8x1xf32>
    %94 = math.rsqrt %93 : vector<8x1xf32>
    %95 = vector.broadcast %94 : vector<8x1xf32> to vector<8x256xf32>
    %96 = arith.mulf %91, %95 : vector<8x256xf32>
    %97 = tpu.concatenate %75, %96 in 1 : vector<8x256xf32>, vector<8x256xf32> -> vector<8x512xf32>
    %cst_24 = arith.constant 0.000000e+00 : f32
    %98 = vector.broadcast %cst_24 : f32 to vector<8x512xf32>
    %99 = arith.maximumf %97, %98 : vector<8x512xf32>
    %c16_i32_25 = arith.constant 16 : i32
    %100 = tpu.dynamic_rotate %99 by %c16_i32_25 dim 1 : vector<8x512xf32>, i32 -> vector<8x512xf32>
    %c496_i32_26 = arith.constant 496 : i32
    %101 = tpu.dynamic_rotate %99 by %c496_i32_26 dim 1 : vector<8x512xf32>, i32 -> vector<8x512xf32>
    %102 = vector.shape_cast %9 : vector<1x512xi1> to vector<1x512xi1>
    %103 = vector.broadcast %102 : vector<1x512xi1> to vector<8x512xi1>
    %104 = arith.select %103, %101, %100 : vector<8x512xi1>, vector<8x512xf32>
    %105 = vector.shape_cast %11 : vector<1x512xi1> to vector<1x512xi1>
    %106 = vector.broadcast %105 : vector<1x512xi1> to vector<8x512xi1>
    %107 = arith.select %106, %100, %101 : vector<8x512xi1>, vector<8x512xf32>
    %c1_i32_27 = arith.constant 1 : i32
    %108 = tpu.dynamic_rotate %104 by %c1_i32_27 dim 1 : vector<8x512xf32>, i32 -> vector<8x512xf32>
    %c511_i32_28 = arith.constant 511 : i32
    %109 = tpu.dynamic_rotate %104 by %c511_i32_28 dim 1 : vector<8x512xf32>, i32 -> vector<8x512xf32>
    %110 = vector.shape_cast %13 : vector<1x512xi1> to vector<1x512xi1>
    %111 = vector.broadcast %110 : vector<1x512xi1> to vector<8x512xi1>
    %112 = arith.select %111, %109, %108 : vector<8x512xi1>, vector<8x512xf32>
    %113 = vector.shape_cast %15 : vector<1x512xi1> to vector<1x512xi1>
    %114 = vector.broadcast %113 : vector<1x512xi1> to vector<8x512xi1>
    %115 = arith.select %114, %108, %109 : vector<8x512xi1>, vector<8x512xf32>
    %c1_i32_29 = arith.constant 1 : i32
    %116 = tpu.dynamic_rotate %99 by %c1_i32_29 dim 1 : vector<8x512xf32>, i32 -> vector<8x512xf32>
    %c511_i32_30 = arith.constant 511 : i32
    %117 = tpu.dynamic_rotate %99 by %c511_i32_30 dim 1 : vector<8x512xf32>, i32 -> vector<8x512xf32>
    %118 = vector.shape_cast %13 : vector<1x512xi1> to vector<1x512xi1>
    %119 = vector.broadcast %118 : vector<1x512xi1> to vector<8x512xi1>
    %120 = arith.select %119, %117, %116 : vector<8x512xi1>, vector<8x512xf32>
    %121 = vector.shape_cast %15 : vector<1x512xi1> to vector<1x512xi1>
    %122 = vector.broadcast %121 : vector<1x512xi1> to vector<8x512xi1>
    %123 = arith.select %122, %116, %117 : vector<8x512xi1>, vector<8x512xf32>
    %c1_i32_31 = arith.constant 1 : i32
    %124 = tpu.dynamic_rotate %107 by %c1_i32_31 dim 1 : vector<8x512xf32>, i32 -> vector<8x512xf32>
    %c511_i32_32 = arith.constant 511 : i32
    %125 = tpu.dynamic_rotate %107 by %c511_i32_32 dim 1 : vector<8x512xf32>, i32 -> vector<8x512xf32>
    %126 = vector.shape_cast %13 : vector<1x512xi1> to vector<1x512xi1>
    %127 = vector.broadcast %126 : vector<1x512xi1> to vector<8x512xi1>
    %128 = arith.select %127, %125, %124 : vector<8x512xi1>, vector<8x512xf32>
    %129 = vector.shape_cast %15 : vector<1x512xi1> to vector<1x512xi1>
    %130 = vector.broadcast %129 : vector<1x512xi1> to vector<8x512xi1>
    %131 = arith.select %130, %124, %125 : vector<8x512xi1>, vector<8x512xf32>
    %132 = tpu.concatenate %112, %104, %115, %120, %99, %123, %128, %107, %131 in 0 : vector<8x512xf32>, vector<8x512xf32>, vector<8x512xf32>, vector<8x512xf32>, vector<8x512xf32>, vector<8x512xf32>, vector<8x512xf32>, vector<8x512xf32>, vector<8x512xf32> -> vector<72x512xf32>
    %133 = arith.truncf %132 : vector<72x512xf32> to vector<72x512xbf16>
    %c0_33 = arith.constant 0 : index
    %c0_34 = arith.constant 0 : index
    %134 = vector.load %arg4[%c0_33, %c0_34] : memref<8x72xbf16, #tpu.memory_space<vmem>>, vector<8x72xbf16>
    %cst_35 = arith.constant dense<0.000000e+00> : vector<8x512xf32>
    %135 = tpu.matmul %134, %133, %cst_35 {dimension_numbers = #tpu.dot_dimension_numbers<[1], [0], [0], [1], [0, 0, 1, 1], [], []>} : vector<8x72xbf16>, vector<72x512xbf16>, vector<8x512xf32> -> vector<8x512xf32>
    %c0_36 = arith.constant 0 : index
    %c0_37 = arith.constant 0 : index
    %136 = vector.load %arg5[%c0_36, %c0_37] : memref<8x1xf32, #tpu.memory_space<vmem>>, vector<8x1xf32>
    %137 = vector.broadcast %136 : vector<8x1xf32> to vector<8x512xf32>
    %138 = arith.addf %135, %137 : vector<8x512xf32>
    %139 = vector.extract_strided_slice %138 {offsets = [0, 0], sizes = [8, 256], strides = [1, 1]} : vector<8x512xf32> to vector<8x256xf32>
    %cst_38 = arith.constant dense<0.000000e+00> : vector<8xf32>
    %140 = vector.multi_reduction <add>, %139, %cst_38 [1] : vector<8x256xf32> to vector<8xf32>
    %141 = vector.shape_cast %140 : vector<8xf32> to vector<8x1xf32>
    %cst_39 = arith.constant 3.906250e-03 : f32
    %142 = vector.broadcast %cst_39 : f32 to vector<8x1xf32>
    %143 = arith.mulf %141, %142 : vector<8x1xf32>
    %144 = arith.mulf %139, %139 : vector<8x256xf32>
    %cst_40 = arith.constant dense<0.000000e+00> : vector<8xf32>
    %145 = vector.multi_reduction <add>, %144, %cst_40 [1] : vector<8x256xf32> to vector<8xf32>
    %146 = vector.shape_cast %145 : vector<8xf32> to vector<8x1xf32>
    %cst_41 = arith.constant 3.906250e-03 : f32
    %147 = vector.broadcast %cst_41 : f32 to vector<8x1xf32>
    %148 = arith.mulf %146, %147 : vector<8x1xf32>
    %149 = arith.mulf %143, %143 : vector<8x1xf32>
    %150 = arith.subf %148, %149 : vector<8x1xf32>
    %cst_42 = arith.constant 0.000000e+00 : f32
    %151 = vector.broadcast %cst_42 : f32 to vector<8x1xf32>
    %152 = arith.maximumf %150, %151 : vector<8x1xf32>
    %153 = vector.broadcast %143 : vector<8x1xf32> to vector<8x256xf32>
    %154 = arith.subf %139, %153 : vector<8x256xf32>
    %cst_43 = arith.constant 9.99999974E-6 : f32
    %155 = vector.broadcast %cst_43 : f32 to vector<8x1xf32>
    %156 = arith.addf %152, %155 : vector<8x1xf32>
    %157 = math.rsqrt %156 : vector<8x1xf32>
    %158 = vector.broadcast %157 : vector<8x1xf32> to vector<8x256xf32>
    %159 = arith.mulf %154, %158 : vector<8x256xf32>
    %160 = vector.extract_strided_slice %138 {offsets = [0, 256], sizes = [8, 256], strides = [1, 1]} : vector<8x512xf32> to vector<8x256xf32>
    %cst_44 = arith.constant dense<0.000000e+00> : vector<8xf32>
    %161 = vector.multi_reduction <add>, %160, %cst_44 [1] : vector<8x256xf32> to vector<8xf32>
    %162 = vector.shape_cast %161 : vector<8xf32> to vector<8x1xf32>
    %cst_45 = arith.constant 3.906250e-03 : f32
    %163 = vector.broadcast %cst_45 : f32 to vector<8x1xf32>
    %164 = arith.mulf %162, %163 : vector<8x1xf32>
    %165 = arith.mulf %160, %160 : vector<8x256xf32>
    %cst_46 = arith.constant dense<0.000000e+00> : vector<8xf32>
    %166 = vector.multi_reduction <add>, %165, %cst_46 [1] : vector<8x256xf32> to vector<8xf32>
    %167 = vector.shape_cast %166 : vector<8xf32> to vector<8x1xf32>
    %cst_47 = arith.constant 3.906250e-03 : f32
    %168 = vector.broadcast %cst_47 : f32 to vector<8x1xf32>
    %169 = arith.mulf %167, %168 : vector<8x1xf32>
    %170 = arith.mulf %164, %164 : vector<8x1xf32>
    %171 = arith.subf %169, %170 : vector<8x1xf32>
    %cst_48 = arith.constant 0.000000e+00 : f32
    %172 = vector.broadcast %cst_48 : f32 to vector<8x1xf32>
    %173 = arith.maximumf %171, %172 : vector<8x1xf32>
    %174 = vector.broadcast %164 : vector<8x1xf32> to vector<8x256xf32>
    %175 = arith.subf %160, %174 : vector<8x256xf32>
    %cst_49 = arith.constant 9.99999974E-6 : f32
    %176 = vector.broadcast %cst_49 : f32 to vector<8x1xf32>
    %177 = arith.addf %173, %176 : vector<8x1xf32>
    %178 = math.rsqrt %177 : vector<8x1xf32>
    %179 = vector.broadcast %178 : vector<8x1xf32> to vector<8x256xf32>
    %180 = arith.mulf %175, %179 : vector<8x256xf32>
    %181 = tpu.concatenate %159, %180 in 1 : vector<8x256xf32>, vector<8x256xf32> -> vector<8x512xf32>
    %182 = arith.addf %0, %181 : vector<8x512xf32>
    %c0_50 = arith.constant 0 : index
    %c0_51 = arith.constant 0 : index
    %183 = vector.load %arg6[%c0_50, %c0_51] : memref<8x512xf32, #tpu.memory_space<vmem>>, vector<8x512xf32>
    tpu.vector_store %arg6[%c0_50, %c0_51], %182 {strides = array<i32>} : memref<8x512xf32, #tpu.memory_space<vmem>>, vector<8x512xf32>,
    return
  }
  func.func @transform_0(%arg0: i32) -> (i32, i32) {
    %c0_i32 = arith.constant 0 : i32
    %c0_i32_0 = arith.constant 0 : i32
    return %c0_i32, %arg0 : i32, i32
  }
  func.func @transform_1(%arg0: i32) -> (i32, i32) {
    %c0_i32 = arith.constant 0 : i32
    %c0_i32_0 = arith.constant 0 : i32
    %c0_i32_1 = arith.constant 0 : i32
    return %c0_i32, %c0_i32_0 : i32, i32
  }
  func.func @transform_2(%arg0: i32) -> (i32, i32) {
    %c0_i32 = arith.constant 0 : i32
    %c0_i32_0 = arith.constant 0 : i32
    %c0_i32_1 = arith.constant 0 : i32
    return %c0_i32, %c0_i32_0 : i32, i32
  }
  func.func @transform_3(%arg0: i32) -> (i32, i32) {
    %c0_i32 = arith.constant 0 : i32
    %c0_i32_0 = arith.constant 0 : i32
    %c0_i32_1 = arith.constant 0 : i32
    return %c0_i32, %c0_i32_0 : i32, i32
  }
  func.func @transform_4(%arg0: i32) -> (i32, i32) {
    %c0_i32 = arith.constant 0 : i32
    %c0_i32_0 = arith.constant 0 : i32
    %c0_i32_1 = arith.constant 0 : i32
    return %c0_i32, %c0_i32_0 : i32, i32
  }
  func.func @transform_5(%arg0: i32) -> (i32, i32) {
    %c0_i32 = arith.constant 0 : i32
    %c0_i32_0 = arith.constant 0 : i32
    return %c0_i32, %arg0 : i32, i32
  }
}

</mosaic_0001>

<llo_original>
// kernel: tpu_custom_call.1
$region0: #{tpu_custom_call.1}
  #allocation0 [shape = 'u32[]', space=smem, size = 0x4, offset = 0x4, fixed_abs, tag = 'smem constant byte address 0x4 - core index']
  #allocation1 [shape = 'u32[144,128]{1,0:T(1,128)}', space=vmem, size = 0x12000, scoped, tag = 'internal scratch']
  %s0 = inlined_call_operand.hbm [shape: f32[8,512], index: 0, kind: input, shape index: {}]
  %s1 = inlined_call_operand.vmem [shape: bf16[8,72], index: 1, kind: input, shape index: {}]
  %s2 = inlined_call_operand.vmem [shape: f32[8,1], index: 2, kind: input, shape index: {}]
  %s3 = inlined_call_operand.vmem [shape: bf16[8,72], index: 3, kind: input, shape index: {}]
  %s4 = inlined_call_operand.vmem [shape: f32[8,1], index: 4, kind: input, shape index: {}]
  %s5 = inlined_call_operand.hbm [shape: f32[8,512], index: 5, kind: output, shape index: {}]
  %s6 = sld [smem:[#allocation0]]
  $region34: #{tpu_custom_call.1} parent=0
    _
  %s8 = ssub.s32 1, %s6
  %s9 = scalar_select 0, %s8, %s6
  $region1: #{tpu_custom_call.1} parent=0
    #allocation2 [shape = 'u8[16384]{0}', space=vmem, size = 0x4000, scoped, tag = 'input window, operand 0, single buffered']
    #allocation3 [shape = 's32[1]{0}', space=sflag, size = 0x4, scoped, tag = 'scoped memory for tpu_custom_call.1']
    #allocation4 [shape = 's32[1]{0}', space=sflag, size = 0x4, scoped, tag = 'scoped memory for tpu_custom_call.1']
    #allocation5 [shape = 'u8[16384]{0}', space=vmem, size = 0x4000, scoped, tag = 'output window, operand 0, single buffered']
    %10 = vsyncpa [#allocation3], 0
    %11 = vsyncpa [#allocation4], 0
    // Predicated region
    $region2: #{tpu_custom_call.1} parent=1 // pred_check
      _
    $region3: #{tpu_custom_call.1} parent=1 // pred_check_branch
      %13 = sbr.rel (0) target = $region5
    $region4: #{tpu_custom_call.1} parent=1 // pred_region
      %s15 = ssub.s32 512, 512
      %16 = vsyncadd [#allocation3], %s15
      %s18 = sshll.u32 [#allocation2], 4
      %s19 = int_to_ptr.vmem [resolvable:$true] %s18
      %21 = dma.hbm_to_vmem [thread:$0]  %s0, 512, %s19, [#allocation3]
    $region5: #{tpu_custom_call.1} parent=1 // pred_fallthru
      _
    // Predicated region
    $region6: #{tpu_custom_call.1} parent=1 // pred_check
      _
    $region7: #{tpu_custom_call.1} parent=1 // pred_check_branch
      %23 = sbr.rel (0) target = $region9
    $region8: #{tpu_custom_call.1} parent=1 // pred_region
      _
    $region9: #{tpu_custom_call.1} parent=1 // pred_fallthru
      _
    // Predicated region
    $region10: #{tpu_custom_call.1} parent=1 // pred_check
      _
    $region11: #{tpu_custom_call.1} parent=1 // pred_check_branch
      %25 = sbr.rel (0) target = $region13
    $region12: #{tpu_custom_call.1} parent=1 // pred_region
      _
    $region13: #{tpu_custom_call.1} parent=1 // pred_fallthru
      _
    // Predicated region
    $region14: #{tpu_custom_call.1} parent=1 // pred_check
      _
    $region15: #{tpu_custom_call.1} parent=1 // pred_check_branch
      %27 = sbr.rel (0) target = $region17
    $region16: #{tpu_custom_call.1} parent=1 // pred_region
      _
    $region17: #{tpu_custom_call.1} parent=1 // pred_fallthru
      _
    // Predicated region
    $region18: #{tpu_custom_call.1} parent=1 // pred_check
      _
    $region19: #{tpu_custom_call.1} parent=1 // pred_check_branch
      %29 = sbr.rel (0) target = $region21
    $region20: #{tpu_custom_call.1} parent=1 // pred_region
      _
    $region21: #{tpu_custom_call.1} parent=1 // pred_fallthru
      _
    // Predicated region
    $region22: #{tpu_custom_call.1} parent=1 // pred_check
      _
    $region23: #{tpu_custom_call.1} parent=1 // pred_check_branch
      %31 = sbr.rel (0) target = $region25
    $region24: #{tpu_custom_call.1} parent=1 // pred_region
      %32 = dma.done [#allocation3], 512
    $region25: #{tpu_custom_call.1} parent=1 // pred_fallthru
      _
    %v34 = vld [vmem:[#allocation2] sm:$0xff]
    %v35 = vld [vmem:[#allocation2 + $0x8] sm:$0xff]
    %v36 = vld [vmem:[#allocation2 + $0x10] sm:$0xff]
    %v37 = vld [vmem:[#allocation2 + $0x18] sm:$0xff]
    %v38 = vlaneseq
    %v39 = vand.u32 %v38, 127
    %v40 = vadd.s32 %v39, 128
    %v41 = vadd.s32 %v39, 256
    %v42 = vadd.s32 %v39, 384
    %v43 = vand.u32 %v39, 255
    %v44 = vand.u32 %v40, 255
    %v45 = vand.u32 %v41, 255
    %v46 = vand.u32 %v42, 255
    %v47 = vand.u32 %v43, 15
    %v48 = vand.u32 %v44, 15
    %v49 = vand.u32 %v45, 15
    %v50 = vand.u32 %v46, 15
    %v51 = vshra.s32 %v43, 4
    %v52 = vshra.s32 %v44, 4
    %v53 = vshra.s32 %v45, 4
    %v54 = vshra.s32 %v46, 4
    %vm55 = vcmp.eq.s32.totalorder %v51, 0
    %vm56 = vcmp.eq.s32.totalorder %v52, 0
    %vm57 = vcmp.eq.s32.totalorder %v53, 0
    %vm58 = vcmp.eq.s32.totalorder %v54, 0
    %vm59 = vcmp.eq.s32.totalorder %v51, 15
    %vm60 = vcmp.eq.s32.totalorder %v52, 15
    %vm61 = vcmp.eq.s32.totalorder %v53, 15
    %vm62 = vcmp.eq.s32.totalorder %v54, 15
    %vm63 = vcmp.eq.s32.totalorder %v47, 0
    %vm64 = vcmp.eq.s32.totalorder %v48, 0
    %vm65 = vcmp.eq.s32.totalorder %v49, 0
    %vm66 = vcmp.eq.s32.totalorder %v50, 0
    %vm67 = vcmp.eq.s32.totalorder %v47, 15
    %vm68 = vcmp.eq.s32.totalorder %v48, 15
    %vm69 = vcmp.eq.s32.totalorder %v49, 15
    %vm70 = vcmp.eq.s32.totalorder %v50, 15
    %71 = vrot.lane.b32.xlu0 %v34, 16
    %v72 = vpop.permute.xlu0 %71
    %73 = vrot.lane.b32.xlu0 %v35, 16
    %v74 = vpop.permute.xlu0 %73
    %75 = vrot.lane.b32.xlu0 %v36, 16
    %v76 = vpop.permute.xlu0 %75
    %77 = vrot.lane.b32.xlu0 %v37, 16
    %v78 = vpop.permute.xlu0 %77
    %vm79 = vcmp.lt.s32.totalorder %v39, 16
    %v80 = vsel %vm79, %v76, %v78
    %v81 = vsel %vm79, %v74, %v76
    %v82 = vsel %vm79, %v72, %v74
    %v83 = vsel %vm79, %v78, %v72
    %84 = vrot.lane.b32.xlu0 %v34, 112
    %v85 = vpop.permute.xlu0 %84
    %86 = vrot.lane.b32.xlu0 %v35, 112
    %v87 = vpop.permute.xlu0 %86
    %88 = vrot.lane.b32.xlu0 %v36, 112
    %v89 = vpop.permute.xlu0 %88
    %90 = vrot.lane.b32.xlu0 %v37, 112
    %v91 = vpop.permute.xlu0 %90
    %vm92 = vcmp.lt.s32.totalorder %v39, 112
    %v93 = vsel %vm92, %v89, %v91
    %v94 = vsel %vm92, %v87, %v89
    %v95 = vsel %vm92, %v85, %v87
    %v96 = vsel %vm92, %v91, %v85
    %v97 = vsel %vm55, 1, 0
    %v98 = vsel %vm56, 1, 0
    %v99 = vsel %vm57, 1, 0
    %v100 = vsel %vm58, 1, 0
    %vm101 = vcmp.eq.s32.totalorder %v97, 1
    %vm102 = vcmp.eq.s32.totalorder %v98, 1
    %vm103 = vcmp.eq.s32.totalorder %v99, 1
    %vm104 = vcmp.eq.s32.totalorder %v100, 1
    %v105 = vsel %vm101, %v95, %v83
    %v106 = vsel %vm102, %v94, %v82
    %v107 = vsel %vm103, %v93, %v81
    %v108 = vsel %vm104, %v96, %v80
    %v109 = vsel %vm59, 1, 0
    %v110 = vsel %vm60, 1, 0
    %v111 = vsel %vm61, 1, 0
    %v112 = vsel %vm62, 1, 0
    %vm113 = vcmp.eq.s32.totalorder %v109, 1
    %vm114 = vcmp.eq.s32.totalorder %v110, 1
    %vm115 = vcmp.eq.s32.totalorder %v111, 1
    %vm116 = vcmp.eq.s32.totalorder %v112, 1
    %v117 = vsel %vm113, %v83, %v95
    %v118 = vsel %vm114, %v82, %v94
    %v119 = vsel %vm115, %v81, %v93
    %v120 = vsel %vm116, %v80, %v96
    %121 = vrot.lane.b32.xlu0 %v105, 1
    %v122 = vpop.permute.xlu0 %121
    %123 = vrot.lane.b32.xlu0 %v106, 1
    %v124 = vpop.permute.xlu0 %123
    %125 = vrot.lane.b32.xlu0 %v107, 1
    %v126 = vpop.permute.xlu0 %125
    %127 = vrot.lane.b32.xlu0 %v108, 1
    %v128 = vpop.permute.xlu0 %127
    %vm129 = vcmp.lt.s32.totalorder %v39, 1
    %v130 = vsel %vm129, %v126, %v128
    %v131 = vsel %vm129, %v124, %v126
    %v132 = vsel %vm129, %v122, %v124
    %v133 = vsel %vm129, %v128, %v122
    %134 = vrot.lane.b32.xlu0 %v105, 127
    %v135 = vpop.permute.xlu0 %134
    %136 = vrot.lane.b32.xlu0 %v106, 127
    %v137 = vpop.permute.xlu0 %136
    %138 = vrot.lane.b32.xlu0 %v107, 127
    %v139 = vpop.permute.xlu0 %138
    %140 = vrot.lane.b32.xlu0 %v108, 127
    %v141 = vpop.permute.xlu0 %140
    %vm142 = vcmp.lt.s32.totalorder %v39, 127
    %v143 = vsel %vm142, %v139, %v141
    %v144 = vsel %vm142, %v137, %v139
    %v145 = vsel %vm142, %v135, %v137
    %v146 = vsel %vm142, %v141, %v135
    %v147 = vsel %vm63, 1, 0
    %v148 = vsel %vm64, 1, 0
    %v149 = vsel %vm65, 1, 0
    %v150 = vsel %vm66, 1, 0
    %vm151 = vcmp.eq.s32.totalorder %v147, 1
    %vm152 = vcmp.eq.s32.totalorder %v148, 1
    %vm153 = vcmp.eq.s32.totalorder %v149, 1
    %vm154 = vcmp.eq.s32.totalorder %v150, 1
    %v155 = vsel %vm151, %v145, %v133
    %v156 = vsel %vm152, %v144, %v132
    %v157 = vsel %vm153, %v143, %v131
    %v158 = vsel %vm154, %v146, %v130
    %v159 = vsel %vm67, 1, 0
    %v160 = vsel %vm68, 1, 0
    %v161 = vsel %vm69, 1, 0
    %v162 = vsel %vm70, 1, 0
    %vm163 = vcmp.eq.s32.totalorder %v159, 1
    %vm164 = vcmp.eq.s32.totalorder %v160, 1
    %vm165 = vcmp.eq.s32.totalorder %v161, 1
    %vm166 = vcmp.eq.s32.totalorder %v162, 1
    %v167 = vsel %vm163, %v133, %v145
    %v168 = vsel %vm164, %v132, %v144
    %v169 = vsel %vm165, %v131, %v143
    %v170 = vsel %vm166, %v130, %v146
    %171 = vrot.lane.b32.xlu0 %v34, 1
    %v172 = vpop.permute.xlu0 %171
    %173 = vrot.lane.b32.xlu0 %v35, 1
    %v174 = vpop.permute.xlu0 %173
    %175 = vrot.lane.b32.xlu0 %v36, 1
    %v176 = vpop.permute.xlu0 %175
    %177 = vrot.lane.b32.xlu0 %v37, 1
    %v178 = vpop.permute.xlu0 %177
    %v179 = vsel %vm129, %v176, %v178
    %v180 = vsel %vm129, %v174, %v176
    %v181 = vsel %vm129, %v172, %v174
    %v182 = vsel %vm129, %v178, %v172
    %183 = vrot.lane.b32.xlu0 %v34, 127
    %v184 = vpop.permute.xlu0 %183
    %185 = vrot.lane.b32.xlu0 %v35, 127
    %v186 = vpop.permute.xlu0 %185
    %187 = vrot.lane.b32.xlu0 %v36, 127
    %v188 = vpop.permute.xlu0 %187
    %189 = vrot.lane.b32.xlu0 %v37, 127
    %v190 = vpop.permute.xlu0 %189
    %v191 = vsel %vm142, %v188, %v190
    %v192 = vsel %vm142, %v186, %v188
    %v193 = vsel %vm142, %v184, %v186
    %v194 = vsel %vm142, %v190, %v184
    %v195 = vsel %vm151, %v193, %v182
    %v196 = vsel %vm152, %v192, %v181
    %v197 = vsel %vm153, %v191, %v180
    %v198 = vsel %vm154, %v194, %v179
    %v199 = vsel %vm163, %v182, %v193
    %v200 = vsel %vm164, %v181, %v192
    %v201 = vsel %vm165, %v180, %v191
    %v202 = vsel %vm166, %v179, %v194
    %203 = vrot.lane.b32.xlu0 %v117, 1
    %v204 = vpop.permute.xlu0 %203
    %205 = vrot.lane.b32.xlu0 %v118, 1
    %v206 = vpop.permute.xlu0 %205
    %207 = vrot.lane.b32.xlu0 %v119, 1
    %v208 = vpop.permute.xlu0 %207
    %209 = vrot.lane.b32.xlu0 %v120, 1
    %v210 = vpop.permute.xlu0 %209
    %v211 = vsel %vm129, %v208, %v210
    %v212 = vsel %vm129, %v206, %v208
    %v213 = vsel %vm129, %v204, %v206
    %v214 = vsel %vm129, %v210, %v204
    %215 = vrot.lane.b32.xlu0 %v117, 127
    %v216 = vpop.permute.xlu0 %215
    %217 = vrot.lane.b32.xlu0 %v118, 127
    %v218 = vpop.permute.xlu0 %217
    %219 = vrot.lane.b32.xlu0 %v119, 127
    %v220 = vpop.permute.xlu0 %219
    %221 = vrot.lane.b32.xlu0 %v120, 127
    %v222 = vpop.permute.xlu0 %221
    %v223 = vsel %vm142, %v220, %v222
    %v224 = vsel %vm142, %v218, %v220
    %v225 = vsel %vm142, %v216, %v218
    %v226 = vsel %vm142, %v222, %v216
    %v227 = vsel %vm151, %v225, %v214
    %v228 = vsel %vm152, %v224, %v213
    %v229 = vsel %vm153, %v223, %v212
    %v230 = vsel %vm154, %v226, %v211
    %v231 = vsel %vm163, %v214, %v225
    %v232 = vsel %vm164, %v213, %v224
    %v233 = vsel %vm165, %v212, %v223
    %v234 = vsel %vm166, %v211, %v226
    %v235 = vpack.c.bf16 %v105, %v155
    %v236 = vpack.c.bf16 %v106, %v156
    %v237 = vpack.c.bf16 %v107, %v157
    %v238 = vpack.c.bf16 %v108, %v158
    %v239 = vpack.c.bf16 %v195, %v167
    %v240 = vpack.c.bf16 %v196, %v168
    %v241 = vpack.c.bf16 %v197, %v169
    %v242 = vpack.c.bf16 %v198, %v170
    %v243 = vpack.c.bf16 %v199, %v34
    %v244 = vpack.c.bf16 %v200, %v35
    %v245 = vpack.c.bf16 %v201, %v36
    %v246 = vpack.c.bf16 %v202, %v37
    %v247 = vpack.c.bf16 %v117, %v227
    %v248 = vpack.c.bf16 %v118, %v228
    %v249 = vpack.c.bf16 %v119, %v229
    %v250 = vpack.c.bf16 %v120, %v230
    %v251 = vpack.c.bf16 %v231, %v231
    %v252 = vpack.c.bf16 %v232, %v232
    %v253 = vpack.c.bf16 %v233, %v233
    %v254 = vpack.c.bf16 %v234, %v234
    %v255 = vld [vmem:[%s1] sm:$0xf]
    %v256 = vld [vmem:[%s2] sm:$0xff]
    %258 = vset.pattern.permute.xlu0 0
    %259 = vperm.xlu0 %258, %v256
    %v260 = vpop.permute.xlu0 %259
    %vm262 = vcmask 588800
    %v264 = vsel %vm262, %v255, 0
    %vm266 = vcmask 1043456
    %v268 = vsel %vm266, %v251, 0
    %v271 = vsel %vm266, %v252, 0
    %v274 = vsel %vm266, %v253, 0
    %v277 = vsel %vm266, %v254, 0
    %279 = vmatprep.subr.bf16.mxu0 0
    %280 = vmatpush1.bf16.msra.mxu0 0
    %281 = vmatprep.subr.bf16.mxu0 0
    %282 = vmatpush1.bf16.msra.mxu0 0
    %283 = vmatprep.subr.bf16.mxu0 0
    %284 = vmatpush1.bf16.msra.mxu0 0
    %285 = vmatprep.subr.bf16.mxu0 %v271
    %286 = vmatpush1.bf16.msra.mxu0 %v268
    %287 = vmatprep.subr.bf16.mxu0 %v248
    %288 = vmatpush1.bf16.msra.mxu0 %v247
    %289 = vmatprep.subr.bf16.mxu0 %v244
    %290 = vmatpush1.bf16.msra.mxu0 %v243
    %291 = vmatprep.subr.bf16.mxu0 %v240
    %292 = vmatpush1.bf16.msra.mxu0 %v239
    %293 = vmatprep.subr.bf16.mxu0 %v236
    %294 = vmatpush1.bf16.msra.mxu0 %v235
    %295 = vmatprep.subr.bf16.mxu0 0
    %296 = vmatpush2.bf16.msra.mxu0 0
    %297 = vmatprep.subr.bf16.mxu0 0
    %298 = vmatpush2.bf16.msra.mxu0 0
    %299 = vmatprep.subr.bf16.mxu0 0
    %300 = vmatpush2.bf16.msra.mxu0 0
    %301 = vmatprep.subr.bf16.mxu0 0
    %302 = vmatpush2.bf16.msra.mxu0 0
    %303 = vmatprep.subr.bf16.mxu0 0
    %304 = vmatpush2.bf16.msra.mxu0 0
    %305 = vmatprep.subr.bf16.mxu0 0
    %306 = vmatpush2.bf16.msra.mxu0 0
    %307 = vmatprep.subr.bf16.mxu0 0
    %308 = vmatpush2.bf16.msra.mxu0 0
    %309 = vmatprep.subr.bf16.mxu0 0
    %310 = vmatpush2.bf16.msra.mxu0 0
    %311 = vmatprep.mubr.bf16.mxu0 0
    %312 = vmatmul.mubr.bf16.gmra.mxu0 %v264
    %v313 = vpop.f32.mrf.mxu0
    %v314 = vadd.f32 %v260, %v313
    %v315 = vpop.f32.mrf.mxu0
    %v316 = vadd.f32 %v260, %v315
    %v317 = vpop.f32.mrf.mxu0
    %v318 = vpop.f32.mrf.mxu0
    %319 = vdwg.mxu0
    %320 = vmatprep.subr.bf16.mxu0 0
    %321 = vmatpush1.bf16.msra.mxu0 0
    %322 = vmatprep.subr.bf16.mxu0 0
    %323 = vmatpush1.bf16.msra.mxu0 0
    %324 = vmatprep.subr.bf16.mxu0 0
    %325 = vmatpush1.bf16.msra.mxu0 0
    %326 = vmatprep.subr.bf16.mxu0 %v277
    %327 = vmatpush1.bf16.msra.mxu0 %v274
    %328 = vmatprep.subr.bf16.mxu0 %v250
    %329 = vmatpush1.bf16.msra.mxu0 %v249
    %330 = vmatprep.subr.bf16.mxu0 %v246
    %331 = vmatpush1.bf16.msra.mxu0 %v245
    %332 = vmatprep.subr.bf16.mxu0 %v242
    %333 = vmatpush1.bf16.msra.mxu0 %v241
    %334 = vmatprep.subr.bf16.mxu0 %v238
    %335 = vmatpush1.bf16.msra.mxu0 %v237
    %336 = vmatprep.subr.bf16.mxu0 0
    %337 = vmatpush2.bf16.msra.mxu0 0
    %338 = vmatprep.subr.bf16.mxu0 0
    %339 = vmatpush2.bf16.msra.mxu0 0
    %340 = vmatprep.subr.bf16.mxu0 0
    %341 = vmatpush2.bf16.msra.mxu0 0
    %342 = vmatprep.subr.bf16.mxu0 0
    %343 = vmatpush2.bf16.msra.mxu0 0
    %344 = vmatprep.subr.bf16.mxu0 0
    %345 = vmatpush2.bf16.msra.mxu0 0
    %346 = vmatprep.subr.bf16.mxu0 0
    %347 = vmatpush2.bf16.msra.mxu0 0
    %348 = vmatprep.subr.bf16.mxu0 0
    %349 = vmatpush2.bf16.msra.mxu0 0
    %350 = vmatprep.subr.bf16.mxu0 0
    %351 = vmatpush2.bf16.msra.mxu0 0
    %352 = vmatprep.mubr.bf16.mxu0 0
    %353 = vmatmul.mubr.bf16.gmra.mxu0 %v264
    %v354 = vpop.f32.mrf.mxu0
    %v355 = vadd.f32 %v260, %v354
    %v356 = vpop.f32.mrf.mxu0
    %v357 = vadd.f32 %v260, %v356
    %v358 = vpop.f32.mrf.mxu0
    %v359 = vpop.f32.mrf.mxu0
    %360 = vdwg.mxu0
    %v361 = vadd.f32 %v314, %v316
    %362 = vadd.xlane.f32.xlu0 %v361
    %v363 = vpop.xlane.xlu0 %362
    %v364 = vmul.f32 %v363, 0.00390625
    %v365 = vmul.f32 %v314, %v314
    %v366 = vmul.f32 %v316, %v316
    %v367 = vadd.f32 %v365, %v366
    %368 = vadd.xlane.f32.xlu0 %v367
    %v369 = vpop.xlane.xlu0 %368
    %v370 = vmul.f32 %v369, 0.00390625
    %v371 = vmul.f32 %v364, %v364
    %v372 = vsub.f32 %v370, %v371
    %v373 = vmax.f32 %v372, 0.0
    %v374 = vsub.f32 %v314, %v364
    %v375 = vsub.f32 %v316, %v364
    %v376 = vadd.f32 %v373, 1e-05
    %v377 = vrsqrt.pop %v376
    %v378 = vmul.f32 %v374, %v377
    %v379 = vmul.f32 %v375, %v377
    %v380 = vadd.f32 %v355, %v357
    %381 = vadd.xlane.f32.xlu0 %v380
    %v382 = vpop.xlane.xlu0 %381
    %v383 = vmul.f32 %v382, 0.00390625
    %v384 = vmul.f32 %v355, %v355
    %v385 = vmul.f32 %v357, %v357
    %v386 = vadd.f32 %v384, %v385
    %387 = vadd.xlane.f32.xlu0 %v386
    %v388 = vpop.xlane.xlu0 %387
    %v389 = vmul.f32 %v388, 0.00390625
    %v390 = vmul.f32 %v383, %v383
    %v391 = vsub.f32 %v389, %v390
    %v392 = vmax.f32 %v391, 0.0
    %v393 = vsub.f32 %v355, %v383
    %v394 = vsub.f32 %v357, %v383
    %v395 = vadd.f32 %v392, 1e-05
    %v396 = vrsqrt.pop %v395
    %v397 = vmul.f32 %v393, %v396
    %v398 = vmul.f32 %v394, %v396
    %v399 = vmax.f32 %v378, 0.0
    %v400 = vmax.f32 %v379, 0.0
    %v401 = vmax.f32 %v397, 0.0
    %v402 = vmax.f32 %v398, 0.0
    %403 = vrot.lane.b32.xlu0 %v399, 16
    %v404 = vpop.permute.xlu0 %403
    %405 = vrot.lane.b32.xlu0 %v400, 16
    %v406 = vpop.permute.xlu0 %405
    %407 = vrot.lane.b32.xlu0 %v401, 16
    %v408 = vpop.permute.xlu0 %407
    %409 = vrot.lane.b32.xlu0 %v402, 16
    %v410 = vpop.permute.xlu0 %409
    %v411 = vsel %vm79, %v408, %v410
    %v412 = vsel %vm79, %v406, %v408
    %v413 = vsel %vm79, %v404, %v406
    %v414 = vsel %vm79, %v410, %v404
    %415 = vrot.lane.b32.xlu0 %v399, 112
    %v416 = vpop.permute.xlu0 %415
    %417 = vrot.lane.b32.xlu0 %v400, 112
    %v418 = vpop.permute.xlu0 %417
    %419 = vrot.lane.b32.xlu0 %v401, 112
    %v420 = vpop.permute.xlu0 %419
    %421 = vrot.lane.b32.xlu0 %v402, 112
    %v422 = vpop.permute.xlu0 %421
    %v423 = vsel %vm92, %v420, %v422
    %v424 = vsel %vm92, %v418, %v420
    %v425 = vsel %vm92, %v416, %v418
    %v426 = vsel %vm92, %v422, %v416
    %v427 = vsel %vm101, %v425, %v414
    %v428 = vsel %vm102, %v424, %v413
    %v429 = vsel %vm103, %v423, %v412
    %v430 = vsel %vm104, %v426, %v411
    %v431 = vsel %vm113, %v414, %v425
    %v432 = vsel %vm114, %v413, %v424
    %v433 = vsel %vm115, %v412, %v423
    %v434 = vsel %vm116, %v411, %v426
    %435 = vrot.lane.b32.xlu0 %v427, 1
    %v436 = vpop.permute.xlu0 %435
    %437 = vrot.lane.b32.xlu0 %v428, 1
    %v438 = vpop.permute.xlu0 %437
    %439 = vrot.lane.b32.xlu0 %v429, 1
    %v440 = vpop.permute.xlu0 %439
    %441 = vrot.lane.b32.xlu0 %v430, 1
    %v442 = vpop.permute.xlu0 %441
    %v443 = vsel %vm129, %v440, %v442
    %v444 = vsel %vm129, %v438, %v440
    %v445 = vsel %vm129, %v436, %v438
    %v446 = vsel %vm129, %v442, %v436
    %447 = vrot.lane.b32.xlu0 %v427, 127
    %v448 = vpop.permute.xlu0 %447
    %449 = vrot.lane.b32.xlu0 %v428, 127
    %v450 = vpop.permute.xlu0 %449
    %451 = vrot.lane.b32.xlu0 %v429, 127
    %v452 = vpop.permute.xlu0 %451
    %453 = vrot.lane.b32.xlu0 %v430, 127
    %v454 = vpop.permute.xlu0 %453
    %v455 = vsel %vm142, %v452, %v454
    %v456 = vsel %vm142, %v450, %v452
    %v457 = vsel %vm142, %v448, %v450
    %v458 = vsel %vm142, %v454, %v448
    %v459 = vsel %vm151, %v457, %v446
    %v460 = vsel %vm152, %v456, %v445
    %v461 = vsel %vm153, %v455, %v444
    %v462 = vsel %vm154, %v458, %v443
    %v463 = vsel %vm163, %v446, %v457
    %v464 = vsel %vm164, %v445, %v456
    %v465 = vsel %vm165, %v444, %v455
    %v466 = vsel %vm166, %v443, %v458
    %467 = vrot.lane.b32.xlu0 %v399, 1
    %v468 = vpop.permute.xlu0 %467
    %469 = vrot.lane.b32.xlu0 %v400, 1
    %v470 = vpop.permute.xlu0 %469
    %471 = vrot.lane.b32.xlu0 %v401, 1
    %v472 = vpop.permute.xlu0 %471
    %473 = vrot.lane.b32.xlu0 %v402, 1
    %v474 = vpop.permute.xlu0 %473
    %v475 = vsel %vm129, %v472, %v474
    %v476 = vsel %vm129, %v470, %v472
    %v477 = vsel %vm129, %v468, %v470
    %v478 = vsel %vm129, %v474, %v468
    %479 = vrot.lane.b32.xlu0 %v399, 127
    %v480 = vpop.permute.xlu0 %479
    %481 = vrot.lane.b32.xlu0 %v400, 127
    %v482 = vpop.permute.xlu0 %481
    %483 = vrot.lane.b32.xlu0 %v401, 127
    %v484 = vpop.permute.xlu0 %483
    %485 = vrot.lane.b32.xlu0 %v402, 127
    %v486 = vpop.permute.xlu0 %485
    %v487 = vsel %vm142, %v484, %v486
    %v488 = vsel %vm142, %v482, %v484
    %v489 = vsel %vm142, %v480, %v482
    %v490 = vsel %vm142, %v486, %v480
    %v491 = vsel %vm151, %v489, %v478
    %v492 = vsel %vm152, %v488, %v477
    %v493 = vsel %vm153, %v487, %v476
    %v494 = vsel %vm154, %v490, %v475
    %v495 = vsel %vm163, %v478, %v489
    %v496 = vsel %vm164, %v477, %v488
    %v497 = vsel %vm165, %v476, %v487
    %v498 = vsel %vm166, %v475, %v490
    %499 = vrot.lane.b32.xlu0 %v431, 1
    %v500 = vpop.permute.xlu0 %499
    %501 = vrot.lane.b32.xlu0 %v432, 1
    %v502 = vpop.permute.xlu0 %501
    %503 = vrot.lane.b32.xlu0 %v433, 1
    %v504 = vpop.permute.xlu0 %503
    %505 = vrot.lane.b32.xlu0 %v434, 1
    %v506 = vpop.permute.xlu0 %505
    %v507 = vsel %vm129, %v504, %v506
    %v508 = vsel %vm129, %v502, %v504
    %v509 = vsel %vm129, %v500, %v502
    %v510 = vsel %vm129, %v506, %v500
    %511 = vrot.lane.b32.xlu0 %v431, 127
    %v512 = vpop.permute.xlu0 %511
    %513 = vrot.lane.b32.xlu0 %v432, 127
    %v514 = vpop.permute.xlu0 %513
    %515 = vrot.lane.b32.xlu0 %v433, 127
    %v516 = vpop.permute.xlu0 %515
    %517 = vrot.lane.b32.xlu0 %v434, 127
    %v518 = vpop.permute.xlu0 %517
    %v519 = vsel %vm142, %v516, %v518
    %v520 = vsel %vm142, %v514, %v516
    %v521 = vsel %vm142, %v512, %v514
    %v522 = vsel %vm142, %v518, %v512
    %v523 = vsel %vm151, %v521, %v510
    %v524 = vsel %vm152, %v520, %v509
    %v525 = vsel %vm153, %v519, %v508
    %v526 = vsel %vm154, %v522, %v507
    %v527 = vsel %vm163, %v510, %v521
    %v528 = vsel %vm164, %v509, %v520
    %v529 = vsel %vm165, %v508, %v519
    %v530 = vsel %vm166, %v507, %v522
    %v531 = vpack.c.bf16 %v427, %v459
    %v532 = vpack.c.bf16 %v428, %v460
    %v533 = vpack.c.bf16 %v429, %v461
    %v534 = vpack.c.bf16 %v430, %v462
    %v535 = vpack.c.bf16 %v491, %v463
    %v536 = vpack.c.bf16 %v492, %v464
    %v537 = vpack.c.bf16 %v493, %v465
    %v538 = vpack.c.bf16 %v494, %v466
    %v539 = vpack.c.bf16 %v495, %v399
    %v540 = vpack.c.bf16 %v496, %v400
    %v541 = vpack.c.bf16 %v497, %v401
    %v542 = vpack.c.bf16 %v498, %v402
    %v543 = vpack.c.bf16 %v431, %v523
    %v544 = vpack.c.bf16 %v432, %v524
    %v545 = vpack.c.bf16 %v433, %v525
    %v546 = vpack.c.bf16 %v434, %v526
    %v547 = vpack.c.bf16 %v527, %v527
    %v548 = vpack.c.bf16 %v528, %v528
    %v549 = vpack.c.bf16 %v529, %v529
    %v550 = vpack.c.bf16 %v530, %v530
    %v551 = vld [vmem:[%s3] sm:$0xf]
    %v552 = vld [vmem:[%s4] sm:$0xff]
    %554 = vset.pattern.permute.xlu0 0
    %555 = vperm.xlu0 %554, %v552
    %v556 = vpop.permute.xlu0 %555
    %v559 = vsel %vm262, %v551, 0
    %v562 = vsel %vm266, %v547, 0
    %v565 = vsel %vm266, %v548, 0
    %v568 = vsel %vm266, %v549, 0
    %v571 = vsel %vm266, %v550, 0
    %573 = vmatprep.subr.bf16.mxu0 0
    %574 = vmatpush1.bf16.msra.mxu0 0
    %575 = vmatprep.subr.bf16.mxu0 0
    %576 = vmatpush1.bf16.msra.mxu0 0
    %577 = vmatprep.subr.bf16.mxu0 0
    %578 = vmatpush1.bf16.msra.mxu0 0
    %579 = vmatprep.subr.bf16.mxu0 %v565
    %580 = vmatpush1.bf16.msra.mxu0 %v562
    %581 = vmatprep.subr.bf16.mxu0 %v544
    %582 = vmatpush1.bf16.msra.mxu0 %v543
    %583 = vmatprep.subr.bf16.mxu0 %v540
    %584 = vmatpush1.bf16.msra.mxu0 %v539
    %585 = vmatprep.subr.bf16.mxu0 %v536
    %586 = vmatpush1.bf16.msra.mxu0 %v535
    %587 = vmatprep.subr.bf16.mxu0 %v532
    %588 = vmatpush1.bf16.msra.mxu0 %v531
    %589 = vmatprep.subr.bf16.mxu0 0
    %590 = vmatpush2.bf16.msra.mxu0 0
    %591 = vmatprep.subr.bf16.mxu0 0
    %592 = vmatpush2.bf16.msra.mxu0 0
    %593 = vmatprep.subr.bf16.mxu0 0
    %594 = vmatpush2.bf16.msra.mxu0 0
    %595 = vmatprep.subr.bf16.mxu0 0
    %596 = vmatpush2.bf16.msra.mxu0 0
    %597 = vmatprep.subr.bf16.mxu0 0
    %598 = vmatpush2.bf16.msra.mxu0 0
    %599 = vmatprep.subr.bf16.mxu0 0
    %600 = vmatpush2.bf16.msra.mxu0 0
    %601 = vmatprep.subr.bf16.mxu0 0
    %602 = vmatpush2.bf16.msra.mxu0 0
    %603 = vmatprep.subr.bf16.mxu0 0
    %604 = vmatpush2.bf16.msra.mxu0 0
    %605 = vmatprep.mubr.bf16.mxu0 0
    %606 = vmatmul.mubr.bf16.gmra.mxu0 %v559
    %v607 = vpop.f32.mrf.mxu0
    %v608 = vadd.f32 %v556, %v607
    %v609 = vpop.f32.mrf.mxu0
    %v610 = vadd.f32 %v556, %v609
    %v611 = vpop.f32.mrf.mxu0
    %v612 = vpop.f32.mrf.mxu0
    %613 = vdwg.mxu0
    %614 = vmatprep.subr.bf16.mxu0 0
    %615 = vmatpush1.bf16.msra.mxu0 0
    %616 = vmatprep.subr.bf16.mxu0 0
    %617 = vmatpush1.bf16.msra.mxu0 0
    %618 = vmatprep.subr.bf16.mxu0 0
    %619 = vmatpush1.bf16.msra.mxu0 0
    %620 = vmatprep.subr.bf16.mxu0 %v571
    %621 = vmatpush1.bf16.msra.mxu0 %v568
    %622 = vmatprep.subr.bf16.mxu0 %v546
    %623 = vmatpush1.bf16.msra.mxu0 %v545
    %624 = vmatprep.subr.bf16.mxu0 %v542
    %625 = vmatpush1.bf16.msra.mxu0 %v541
    %626 = vmatprep.subr.bf16.mxu0 %v538
    %627 = vmatpush1.bf16.msra.mxu0 %v537
    %628 = vmatprep.subr.bf16.mxu0 %v534
    %629 = vmatpush1.bf16.msra.mxu0 %v533
    %630 = vmatprep.subr.bf16.mxu0 0
    %631 = vmatpush2.bf16.msra.mxu0 0
    %632 = vmatprep.subr.bf16.mxu0 0
    %633 = vmatpush2.bf16.msra.mxu0 0
    %634 = vmatprep.subr.bf16.mxu0 0
    %635 = vmatpush2.bf16.msra.mxu0 0
    %636 = vmatprep.subr.bf16.mxu0 0
    %637 = vmatpush2.bf16.msra.mxu0 0
    %638 = vmatprep.subr.bf16.mxu0 0
    %639 = vmatpush2.bf16.msra.mxu0 0
    %640 = vmatprep.subr.bf16.mxu0 0
    %641 = vmatpush2.bf16.msra.mxu0 0
    %642 = vmatprep.subr.bf16.mxu0 0
    %643 = vmatpush2.bf16.msra.mxu0 0
    %644 = vmatprep.subr.bf16.mxu0 0
    %645 = vmatpush2.bf16.msra.mxu0 0
    %646 = vmatprep.mubr.bf16.mxu0 0
    %647 = vmatmul.mubr.bf16.gmra.mxu0 %v559
    %v648 = vpop.f32.mrf.mxu0
    %v649 = vadd.f32 %v556, %v648
    %v650 = vpop.f32.mrf.mxu0
    %v651 = vadd.f32 %v556, %v650
    %v652 = vpop.f32.mrf.mxu0
    %v653 = vpop.f32.mrf.mxu0
    %654 = vdwg.mxu0
    %v655 = vadd.f32 %v608, %v610
    %656 = vadd.xlane.f32.xlu0 %v655
    %v657 = vpop.xlane.xlu0 %656
    %v658 = vmul.f32 %v657, 0.00390625
    %v659 = vmul.f32 %v608, %v608
    %v660 = vmul.f32 %v610, %v610
    %v661 = vadd.f32 %v659, %v660
    %662 = vadd.xlane.f32.xlu0 %v661
    %v663 = vpop.xlane.xlu0 %662
    %v664 = vmul.f32 %v663, 0.00390625
    %v665 = vmul.f32 %v658, %v658
    %v666 = vsub.f32 %v664, %v665
    %v667 = vmax.f32 %v666, 0.0
    %v668 = vsub.f32 %v608, %v658
    %v669 = vsub.f32 %v610, %v658
    %v670 = vadd.f32 %v667, 1e-05
    %v671 = vrsqrt.pop %v670
    %v672 = vmul.f32 %v668, %v671
    %v673 = vmul.f32 %v669, %v671
    %v674 = vadd.f32 %v649, %v651
    %675 = vadd.xlane.f32.xlu0 %v674
    %v676 = vpop.xlane.xlu0 %675
    %v677 = vmul.f32 %v676, 0.00390625
    %v678 = vmul.f32 %v649, %v649
    %v679 = vmul.f32 %v651, %v651
    %v680 = vadd.f32 %v678, %v679
    %681 = vadd.xlane.f32.xlu0 %v680
    %v682 = vpop.xlane.xlu0 %681
    %v683 = vmul.f32 %v682, 0.00390625
    %v684 = vmul.f32 %v677, %v677
    %v685 = vsub.f32 %v683, %v684
    %v686 = vmax.f32 %v685, 0.0
    %v687 = vsub.f32 %v649, %v677
    %v688 = vsub.f32 %v651, %v677
    %v689 = vadd.f32 %v686, 1e-05
    %v690 = vrsqrt.pop %v689
    %v691 = vmul.f32 %v687, %v690
    %v692 = vmul.f32 %v688, %v690
    %v693 = vadd.f32 %v34, %v672
    %v694 = vadd.f32 %v35, %v673
    %v695 = vadd.f32 %v36, %v691
    %v696 = vadd.f32 %v37, %v692
    %697 = vst [vmem:[#allocation5] sm:$0xff] %v693
    %698 = vst [vmem:[#allocation5 + $0x8] sm:$0xff] %v694
    %699 = vst [vmem:[#allocation5 + $0x10] sm:$0xff] %v695
    %700 = vst [vmem:[#allocation5 + $0x18] sm:$0xff] %v696
    // Predicated region
    $region26: #{tpu_custom_call.1} parent=1 // pred_check
      _
    $region27: #{tpu_custom_call.1} parent=1 // pred_check_branch
      %702 = sbr.rel (0) target = $region29
    $region28: #{tpu_custom_call.1} parent=1 // pred_region
      %s704 = ssub.s32 512, 512
      %705 = vsyncadd [#allocation4], %s704
      %s707 = sshll.u32 [#allocation5], 4
      %s708 = int_to_ptr.vmem [resolvable:$true] %s707
      %710 = dma.vmem_to_hbm [thread:$0]  %s708, 512, %s5, [#allocation4]
    $region29: #{tpu_custom_call.1} parent=1 // pred_fallthru
      _
    // Predicated region
    $region30: #{tpu_custom_call.1} parent=1 // pred_check
      _
    $region31: #{tpu_custom_call.1} parent=1 // pred_check_branch
      %712 = sbr.rel (0) target = $region33
    $region32: #{tpu_custom_call.1} parent=1 // pred_region
      %713 = dma.done [#allocation4], 512
    $region33: #{tpu_custom_call.1} parent=1 // pred_fallthru
      _
    %714 = vsyncpa [#allocation3], 1
    %715 = vsyncpa [#allocation4], 1

</llo_original>
